<compile_context>
chip_gen: v5e
topology: v5e:2x2
jax: 0.10.0
libtpu: 0.0.40
codegen_flags: <defaults>
</compile_context>

<pallas_src>
import math

import jax
import jax.numpy as jnp
from jax.experimental import pallas as pl
from jax.experimental.pallas import tpu as pltpu


def linear_kernel(x_ref, w_ref, b_ref, o_ref):
    # One MXU matmul (f32 accumulate) + f32 bias add. The (1, d_out) bias
    # broadcasts against the (tile_b, d_out) accumulator.
    o_ref[...] = (
        jnp.dot(x_ref[...], w_ref[...], preferred_element_type=jnp.float32)
        + b_ref[...]
    )


def prepare_params(weight, bias):
    """One-time parameter prep (off the per-call hot path).

    weight: (10, 784) f32, bias: (10,) f32
    returns w_t: (784, 10) f32 (pre-transposed), b_row: (1, 10) f32
    """
    w_t = jnp.asarray(weight).T.copy()          # contiguous (d_in, d_out)
    b_row = jnp.asarray(bias).reshape(1, -1)
    return w_t, b_row


def mnist_logistic_forward(x, w_t, b_row, *, batch_tile=2048):
    """x: (bs, 784) f32, w_t: (784, 10) f32, b_row: (1, 10) f32 -> (bs, 10) f32."""
    bs, d_in = x.shape
    d_out = w_t.shape[1]

    flops = 2 * bs * d_in * d_out
    bytes_accessed = (bs * d_in + d_in * d_out + d_out + bs * d_out) * 4
    cost = pl.CostEstimate(flops=flops, transcendentals=0,
                           bytes_accessed=bytes_accessed)

    if bs <= batch_tile or bs % batch_tile != 0:
        # Small batch: single block, no grid — total resident footprint at
        # bs=64 is ~0.23 MB, so any grid would only add per-step overhead.
        return pl.pallas_call(
            linear_kernel,
            out_shape=jax.ShapeDtypeStruct((bs, d_out), jnp.float32),
            in_specs=[
                pl.BlockSpec((bs, d_in), lambda: (0, 0),
                             memory_space=pltpu.MemorySpace.VMEM),
                pl.BlockSpec((d_in, d_out), lambda: (0, 0),
                             memory_space=pltpu.MemorySpace.VMEM),
                pl.BlockSpec((1, d_out), lambda: (0, 0),
                             memory_space=pltpu.MemorySpace.VMEM),
            ],
            out_specs=pl.BlockSpec((bs, d_out), lambda: (0, 0),
                                   memory_space=pltpu.MemorySpace.VMEM),
            cost_estimate=cost,
        )(x, w_t, b_row)

    # Large-batch path (training-scale): tile the batch, parallel grid axis so
    # v7x's two TensorCores both work; weight/bias block index is constant so
    # they stay VMEM-resident across grid steps. 2048-row f32 x tile ≈ 6.4 MB
    # (double-buffered ≈ 12.8 MB) — comfortably under the 32 MiB scoped default.
    grid = (bs // batch_tile,)
    return pl.pallas_call(
        linear_kernel,
        out_shape=jax.ShapeDtypeStruct((bs, d_out), jnp.float32),
        grid=grid,
        in_specs=[
            pl.BlockSpec((batch_tile, d_in), lambda i: (i, 0),
                         memory_space=pltpu.MemorySpace.VMEM),
            pl.BlockSpec((d_in, d_out), lambda i: (0, 0),
                         memory_space=pltpu.MemorySpace.VMEM),
            pl.BlockSpec((1, d_out), lambda i: (0, 0),
                         memory_space=pltpu.MemorySpace.VMEM),
        ],
        out_specs=pl.BlockSpec((batch_tile, d_out), lambda i: (i, 0),
                               memory_space=pltpu.MemorySpace.VMEM),
        compiler_params=pltpu.CompilerParams(
            dimension_semantics=("parallel",)),
        cost_estimate=cost,
    )(x, w_t, b_row)


if __name__ == "__main__":
    bs, d_in, d_out = 64, 784, 10  # shapes implied by the module (bs=64, Linear(784, 10))

    key = jax.random.PRNGKey(0)
    kx, kw, kb = jax.random.split(key, 3)

    # Deterministic inputs (stand-in for x_train[0:bs]).
    x = jax.random.normal(kx, (bs, d_in), dtype=jnp.float32)

    # nn.Linear(784, 10) default init: U(-1/sqrt(in), 1/sqrt(in)) for W and b.
    bound = 1.0 / math.sqrt(d_in)
    weight = jax.random.uniform(kw, (d_out, d_in), jnp.float32, -bound, bound)
    bias = jax.random.uniform(kb, (d_out,), jnp.float32, -bound, bound)

    # One-time parameter prep (pre-transposed, unpadded, f32).
    w_t, b_row = prepare_params(weight, bias)

    # Single jitted launch region for the whole forward.
    fwd = jax.jit(mnist_logistic_forward)
    out = jax.block_until_ready(fwd(x, w_t, b_row))
    assert out.shape == (bs, d_out)
    assert out.dtype == jnp.float32

    # PyTorch-equivalent f32 reference.
    ref = x @ weight.T + bias
    assert jnp.allclose(out, ref, atol=2e-2, rtol=2e-2), (
        float(jnp.max(jnp.abs(out - ref)))
    )

    print("KERNEL_OK")
</pallas_src>

<mosaic_0001>
module attributes {stable_mosaic.version = 11 : i64} {
  func.func @linear_kernel(%arg0: memref<64x784xf32, #tpu.memory_space<vmem>>, %arg1: memref<784x10xf32, #tpu.memory_space<vmem>>, %arg2: memref<1x10xf32, #tpu.memory_space<vmem>>, %arg3: memref<64x10xf32, #tpu.memory_space<vmem>>) attributes {dimension_semantics = [], scalar_prefetch = 0 : i64, scratch_operands = 0 : i64, tpu.core_type = #tpu.core_type<tc>} {
    %c0 = arith.constant 0 : index
    %c0_0 = arith.constant 0 : index
    %0 = vector.load %arg0[%c0, %c0_0] : memref<64x784xf32, #tpu.memory_space<vmem>>, vector<64x784xf32>
    %c0_1 = arith.constant 0 : index
    %c0_2 = arith.constant 0 : index
    %1 = vector.load %arg1[%c0_1, %c0_2] : memref<784x10xf32, #tpu.memory_space<vmem>>, vector<784x10xf32>
    %cst = arith.constant dense<0.000000e+00> : vector<64x10xf32>
    %2 = tpu.matmul %0, %1, %cst {dimension_numbers = #tpu.dot_dimension_numbers<[1], [0], [0], [1], [0, 0, 1, 1], [], []>} : vector<64x784xf32>, vector<784x10xf32>, vector<64x10xf32> -> vector<64x10xf32>
    %c0_3 = arith.constant 0 : index
    %c0_4 = arith.constant 0 : index
    %3 = vector.load %arg2[%c0_3, %c0_4] : memref<1x10xf32, #tpu.memory_space<vmem>>, vector<1x10xf32>
    %4 = vector.broadcast %3 : vector<1x10xf32> to vector<64x10xf32>
    %5 = arith.addf %2, %4 : vector<64x10xf32>
    %c0_5 = arith.constant 0 : index
    %c0_6 = arith.constant 0 : index
    %6 = vector.load %arg3[%c0_5, %c0_6] : memref<64x10xf32, #tpu.memory_space<vmem>>, vector<64x10xf32>
    tpu.vector_store %arg3[%c0_5, %c0_6], %5 {strides = array<i32>} : memref<64x10xf32, #tpu.memory_space<vmem>>, vector<64x10xf32>,
    return
  }
}

</mosaic_0001>

<llo_original>
// kernel: mnist_logistic_forward.1
$region0: #{mnist_logistic_forward.1}
  #allocation0 [shape = 'u32[]', space=smem, size = 0x4, offset = 0x4, fixed_abs, tag = 'smem constant byte address 0x4 - core index']
  #allocation1 [shape = 'u32[72,128]{1,0:T(1,128)}', space=vmem, size = 0x9000, scoped, tag = 'internal scratch']
  %s0 = inlined_call_operand.vmem [shape: f32[64,784], index: 0, kind: input, shape index: {}]
  %s1 = inlined_call_operand.vmem [shape: f32[784,10], index: 1, kind: input, shape index: {}]
  %s2 = inlined_call_operand.vmem [shape: f32[1,10], index: 2, kind: input, shape index: {}]
  %s3 = inlined_call_operand.vmem [shape: f32[64,10], index: 3, kind: output, shape index: {}]
  %s4 = sld [smem:[#allocation0]]
  $region22: #{mnist_logistic_forward.1} parent=0
    _
  %s6 = ssub.s32 1, %s4
  %s7 = scalar_select 0, %s6, %s4
  // Predicated region
  $region2: #{mnist_logistic_forward.1} parent=0 // pred_check
    _
  $region3: #{mnist_logistic_forward.1} parent=0 // pred_check_branch
    %9 = sbr.rel (0) target = $region5
  $region4: #{mnist_logistic_forward.1} parent=0 // pred_region
    _
  $region5: #{mnist_logistic_forward.1} parent=0 // pred_fallthru
    _
  // Predicated region
  $region6: #{mnist_logistic_forward.1} parent=0 // pred_check
    _
  $region7: #{mnist_logistic_forward.1} parent=0 // pred_check_branch
    %11 = sbr.rel (0) target = $region9
  $region8: #{mnist_logistic_forward.1} parent=0 // pred_region
    _
  $region9: #{mnist_logistic_forward.1} parent=0 // pred_fallthru
    _
  // Predicated region
  $region10: #{mnist_logistic_forward.1} parent=0 // pred_check
    _
  $region11: #{mnist_logistic_forward.1} parent=0 // pred_check_branch
    %13 = sbr.rel (0) target = $region13
  $region12: #{mnist_logistic_forward.1} parent=0 // pred_region
    _
  $region13: #{mnist_logistic_forward.1} parent=0 // pred_fallthru
    _
  %v14 = vld [vmem:[%s0] sm:$0xff]
  %v15 = vld [vmem:[%s0 + $0x8] sm:$0xff]
  %v16 = vld [vmem:[%s0 + $0x10] sm:$0xff]
  %v17 = vld [vmem:[%s0 + $0x18] sm:$0xff]
  %v18 = vld [vmem:[%s0 + $0x20] sm:$0xff]
  %v19 = vld [vmem:[%s0 + $0x28] sm:$0xff]
  %v20 = vld [vmem:[%s0 + $0x30] sm:$0xff]
  %v21 = vld [vmem:[%s0 + $0x38] sm:$0xff]
  %v22 = vld [vmem:[%s0 + $0x40] sm:$0xff]
  %v23 = vld [vmem:[%s0 + $0x48] sm:$0xff]
  %v24 = vld [vmem:[%s0 + $0x50] sm:$0xff]
  %v25 = vld [vmem:[%s0 + $0x58] sm:$0xff]
  %v26 = vld [vmem:[%s0 + $0x60] sm:$0xff]
  %v27 = vld [vmem:[%s0 + $0x68] sm:$0xff]
  %v28 = vld [vmem:[%s0 + $0x70] sm:$0xff]
  %v29 = vld [vmem:[%s0 + $0x78] sm:$0xff]
  %v30 = vld [vmem:[%s0 + $0x80] sm:$0xff]
  %v31 = vld [vmem:[%s0 + $0x88] sm:$0xff]
  %v32 = vld [vmem:[%s0 + $0x90] sm:$0xff]
  %v33 = vld [vmem:[%s0 + $0x98] sm:$0xff]
  %v34 = vld [vmem:[%s0 + $0xa0] sm:$0xff]
  %v35 = vld [vmem:[%s0 + $0xa8] sm:$0xff]
  %v36 = vld [vmem:[%s0 + $0xb0] sm:$0xff]
  %v37 = vld [vmem:[%s0 + $0xb8] sm:$0xff]
  %v38 = vld [vmem:[%s0 + $0xc0] sm:$0xff]
  %v39 = vld [vmem:[%s0 + $0xc8] sm:$0xff]
  %v40 = vld [vmem:[%s0 + $0xd0] sm:$0xff]
  %v41 = vld [vmem:[%s0 + $0xd8] sm:$0xff]
  %v42 = vld [vmem:[%s0 + $0xe0] sm:$0xff]
  %v43 = vld [vmem:[%s0 + $0xe8] sm:$0xff]
  %v44 = vld [vmem:[%s0 + $0xf0] sm:$0xff]
  %v45 = vld [vmem:[%s0 + $0xf8] sm:$0xff]
  %v46 = vld [vmem:[%s0 + $0x100] sm:$0xff]
  %v47 = vld [vmem:[%s0 + $0x108] sm:$0xff]
  %v48 = vld [vmem:[%s0 + $0x110] sm:$0xff]
  %v49 = vld [vmem:[%s0 + $0x118] sm:$0xff]
  %v50 = vld [vmem:[%s0 + $0x120] sm:$0xff]
  %v51 = vld [vmem:[%s0 + $0x128] sm:$0xff]
  %v52 = vld [vmem:[%s0 + $0x130] sm:$0xff]
  %v53 = vld [vmem:[%s0 + $0x138] sm:$0xff]
  %v54 = vld [vmem:[%s0 + $0x140] sm:$0xff]
  %v55 = vld [vmem:[%s0 + $0x148] sm:$0xff]
  %v56 = vld [vmem:[%s0 + $0x150] sm:$0xff]
  %v57 = vld [vmem:[%s0 + $0x158] sm:$0xff]
  %v58 = vld [vmem:[%s0 + $0x160] sm:$0xff]
  %v59 = vld [vmem:[%s0 + $0x168] sm:$0xff]
  %v60 = vld [vmem:[%s0 + $0x170] sm:$0xff]
  %v61 = vld [vmem:[%s0 + $0x178] sm:$0xff]
  %v62 = vld [vmem:[%s0 + $0x180] sm:$0xff]
  %v63 = vld [vmem:[%s0 + $0x188] sm:$0xff]
  %v64 = vld [vmem:[%s0 + $0x190] sm:$0xff]
  %v65 = vld [vmem:[%s0 + $0x198] sm:$0xff]
  %v66 = vld [vmem:[%s0 + $0x1a0] sm:$0xff]
  %v67 = vld [vmem:[%s0 + $0x1a8] sm:$0xff]
  %v68 = vld [vmem:[%s0 + $0x1b0] sm:$0xff]
  %v69 = vld [vmem:[%s0 + $0x1b8] sm:$0xff]
  %v70 = vld [vmem:[%s1] sm:$0xff]
  %v71 = vld [vmem:[%s1 + $0x8] sm:$0xff]
  %v72 = vld [vmem:[%s1 + $0x10] sm:$0xff]
  %v73 = vld [vmem:[%s1 + $0x18] sm:$0xff]
  %v74 = vld [vmem:[%s1 + $0x20] sm:$0xff]
  %v75 = vld [vmem:[%s1 + $0x28] sm:$0xff]
  %v76 = vld [vmem:[%s1 + $0x30] sm:$0xff]
  %v77 = vld [vmem:[%s1 + $0x38] sm:$0xff]
  %v78 = vld [vmem:[%s1 + $0x40] sm:$0xff]
  %v79 = vld [vmem:[%s1 + $0x48] sm:$0xff]
  %v80 = vld [vmem:[%s1 + $0x50] sm:$0xff]
  %v81 = vld [vmem:[%s1 + $0x58] sm:$0xff]
  %v82 = vld [vmem:[%s1 + $0x60] sm:$0xff]
  %v83 = vld [vmem:[%s1 + $0x68] sm:$0xff]
  %v84 = vld [vmem:[%s1 + $0x70] sm:$0xff]
  %v85 = vld [vmem:[%s1 + $0x78] sm:$0xff]
  %v86 = vld [vmem:[%s1 + $0x80] sm:$0xff]
  %v87 = vld [vmem:[%s1 + $0x88] sm:$0xff]
  %v88 = vld [vmem:[%s1 + $0x90] sm:$0xff]
  %v89 = vld [vmem:[%s1 + $0x98] sm:$0xff]
  %v90 = vld [vmem:[%s1 + $0xa0] sm:$0xff]
  %v91 = vld [vmem:[%s1 + $0xa8] sm:$0xff]
  %v92 = vld [vmem:[%s1 + $0xb0] sm:$0xff]
  %v93 = vld [vmem:[%s1 + $0xb8] sm:$0xff]
  %v94 = vld [vmem:[%s1 + $0xc0] sm:$0xff]
  %v95 = vld [vmem:[%s1 + $0xc8] sm:$0xff]
  %v96 = vld [vmem:[%s1 + $0xd0] sm:$0xff]
  %v97 = vld [vmem:[%s1 + $0xd8] sm:$0xff]
  %v98 = vld [vmem:[%s1 + $0xe0] sm:$0xff]
  %v99 = vld [vmem:[%s1 + $0xe8] sm:$0xff]
  %v100 = vld [vmem:[%s1 + $0xf0] sm:$0xff]
  %v101 = vld [vmem:[%s1 + $0xf8] sm:$0xff]
  %v102 = vld [vmem:[%s1 + $0x100] sm:$0xff]
  %v103 = vld [vmem:[%s1 + $0x108] sm:$0xff]
  %v104 = vld [vmem:[%s1 + $0x110] sm:$0xff]
  %v105 = vld [vmem:[%s1 + $0x118] sm:$0xff]
  %v106 = vld [vmem:[%s1 + $0x120] sm:$0xff]
  %v107 = vld [vmem:[%s1 + $0x128] sm:$0xff]
  %v108 = vld [vmem:[%s1 + $0x130] sm:$0xff]
  %v109 = vld [vmem:[%s1 + $0x138] sm:$0xff]
  %v110 = vld [vmem:[%s1 + $0x140] sm:$0xff]
  %v111 = vld [vmem:[%s1 + $0x148] sm:$0xff]
  %v112 = vld [vmem:[%s1 + $0x150] sm:$0xff]
  %v113 = vld [vmem:[%s1 + $0x158] sm:$0xff]
  %v114 = vld [vmem:[%s1 + $0x160] sm:$0xff]
  %v115 = vld [vmem:[%s1 + $0x168] sm:$0xff]
  %v116 = vld [vmem:[%s1 + $0x170] sm:$0xff]
  %v117 = vld [vmem:[%s1 + $0x178] sm:$0xff]
  %v118 = vld [vmem:[%s1 + $0x180] sm:$0xff]
  %v119 = vld [vmem:[%s1 + $0x188] sm:$0xff]
  %v120 = vld [vmem:[%s1 + $0x190] sm:$0xff]
  %v121 = vld [vmem:[%s1 + $0x198] sm:$0xff]
  %v122 = vld [vmem:[%s1 + $0x1a0] sm:$0xff]
  %v123 = vld [vmem:[%s1 + $0x1a8] sm:$0xff]
  %v124 = vld [vmem:[%s1 + $0x1b0] sm:$0xff]
  %v125 = vld [vmem:[%s1 + $0x1b8] sm:$0xff]
  %v126 = vld [vmem:[%s1 + $0x1c0] sm:$0xff]
  %v127 = vld [vmem:[%s1 + $0x1c8] sm:$0xff]
  %v128 = vld [vmem:[%s1 + $0x1d0] sm:$0xff]
  %v129 = vld [vmem:[%s1 + $0x1d8] sm:$0xff]
  %v130 = vld [vmem:[%s1 + $0x1e0] sm:$0xff]
  %v131 = vld [vmem:[%s1 + $0x1e8] sm:$0xff]
  %v132 = vld [vmem:[%s1 + $0x1f0] sm:$0xff]
  %v133 = vld [vmem:[%s1 + $0x1f8] sm:$0xff]
  %v134 = vld [vmem:[%s1 + $0x200] sm:$0xff]
  %v135 = vld [vmem:[%s1 + $0x208] sm:$0xff]
  %v136 = vld [vmem:[%s1 + $0x210] sm:$0xff]
  %v137 = vld [vmem:[%s1 + $0x218] sm:$0xff]
  %v138 = vld [vmem:[%s1 + $0x220] sm:$0xff]
  %v139 = vld [vmem:[%s1 + $0x228] sm:$0xff]
  %v140 = vld [vmem:[%s1 + $0x230] sm:$0xff]
  %v141 = vld [vmem:[%s1 + $0x238] sm:$0xff]
  %v142 = vld [vmem:[%s1 + $0x240] sm:$0xff]
  %v143 = vld [vmem:[%s1 + $0x248] sm:$0xff]
  %v144 = vld [vmem:[%s1 + $0x250] sm:$0xff]
  %v145 = vld [vmem:[%s1 + $0x258] sm:$0xff]
  %v146 = vld [vmem:[%s1 + $0x260] sm:$0xff]
  %v147 = vld [vmem:[%s1 + $0x268] sm:$0xff]
  %v148 = vld [vmem:[%s1 + $0x270] sm:$0xff]
  %v149 = vld [vmem:[%s1 + $0x278] sm:$0xff]
  %v150 = vld [vmem:[%s1 + $0x280] sm:$0xff]
  %v151 = vld [vmem:[%s1 + $0x288] sm:$0xff]
  %v152 = vld [vmem:[%s1 + $0x290] sm:$0xff]
  %v153 = vld [vmem:[%s1 + $0x298] sm:$0xff]
  %v154 = vld [vmem:[%s1 + $0x2a0] sm:$0xff]
  %v155 = vld [vmem:[%s1 + $0x2a8] sm:$0xff]
  %v156 = vld [vmem:[%s1 + $0x2b0] sm:$0xff]
  %v157 = vld [vmem:[%s1 + $0x2b8] sm:$0xff]
  %v158 = vld [vmem:[%s1 + $0x2c0] sm:$0xff]
  %v159 = vld [vmem:[%s1 + $0x2c8] sm:$0xff]
  %v160 = vld [vmem:[%s1 + $0x2d0] sm:$0xff]
  %v161 = vld [vmem:[%s1 + $0x2d8] sm:$0xff]
  %v162 = vld [vmem:[%s1 + $0x2e0] sm:$0xff]
  %v163 = vld [vmem:[%s1 + $0x2e8] sm:$0xff]
  %v164 = vld [vmem:[%s1 + $0x2f0] sm:$0xff]
  %v165 = vld [vmem:[%s1 + $0x2f8] sm:$0xff]
  %v166 = vld [vmem:[%s1 + $0x300] sm:$0xff]
  %v167 = vld [vmem:[%s1 + $0x308] sm:$0xff]
  %v168 = vld [vmem:[%s2] sm:$0x1]
  %v170 = vperm.slane %v168, 0
  %vm172 = vcmask 130048
  %v174 = vsel %vm172, %v20, 0
  %v177 = vsel %vm172, %v27, 0
  %v180 = vsel %vm172, %v34, 0
  %v183 = vsel %vm172, %v41, 0
  %v186 = vsel %vm172, %v48, 0
  %v189 = vsel %vm172, %v55, 0
  %v192 = vsel %vm172, %v62, 0
  %v195 = vsel %vm172, %v69, 0
  %197 = vmatpush.msra.mxu0 %v85
  %198 = vmatpush.msra.mxu0 %v84
  %199 = vmatpush.msra.mxu0 %v83
  %200 = vmatpush.msra.mxu0 %v82
  %201 = vmatpush.msra.mxu0 %v81
  %202 = vmatpush.msra.mxu0 %v80
  %203 = vmatpush.msra.mxu0 %v79
  %204 = vmatpush.msra.mxu0 %v78
  %205 = vmatpush.msra.mxu0 %v77
  %206 = vmatpush.msra.mxu0 %v76
  %207 = vmatpush.msra.mxu0 %v75
  %208 = vmatpush.msra.mxu0 %v74
  %209 = vmatpush.msra.mxu0 %v73
  %210 = vmatpush.msra.mxu0 %v72
  %211 = vmatpush.msra.mxu0 %v71
  %212 = vmatpush.msra.mxu0 %v70
  %213 = vmatmul.f32.gmra.mxu0 %v14
  %v214 = vpop.f32.mrf.mxu0
  %v215 = vadd.f32 %v170, %v214
  %216 = vmatmul.f32.gmra.mxu0 %v21
  %v217 = vpop.f32.mrf.mxu0
  %v218 = vadd.f32 %v170, %v217
  %219 = vmatmul.f32.gmra.mxu0 %v28
  %v220 = vpop.f32.mrf.mxu0
  %v221 = vadd.f32 %v170, %v220
  %222 = vmatmul.f32.gmra.mxu0 %v35
  %v223 = vpop.f32.mrf.mxu0
  %v224 = vadd.f32 %v170, %v223
  %225 = vmatmul.f32.gmra.mxu0 %v42
  %v226 = vpop.f32.mrf.mxu0
  %v227 = vadd.f32 %v170, %v226
  %228 = vmatmul.f32.gmra.mxu0 %v49
  %v229 = vpop.f32.mrf.mxu0
  %v230 = vadd.f32 %v170, %v229
  %231 = vmatmul.f32.gmra.mxu0 %v56
  %v232 = vpop.f32.mrf.mxu0
  %v233 = vadd.f32 %v170, %v232
  %234 = vmatmul.f32.gmra.mxu0 %v63
  %v235 = vpop.f32.mrf.mxu0
  %v236 = vadd.f32 %v170, %v235
  %237 = vdwg.mxu0
  %238 = vmatpush.msra.mxu0 %v101
  %239 = vmatpush.msra.mxu0 %v100
  %240 = vmatpush.msra.mxu0 %v99
  %241 = vmatpush.msra.mxu0 %v98
  %242 = vmatpush.msra.mxu0 %v97
  %243 = vmatpush.msra.mxu0 %v96
  %244 = vmatpush.msra.mxu0 %v95
  %245 = vmatpush.msra.mxu0 %v94
  %246 = vmatpush.msra.mxu0 %v93
  %247 = vmatpush.msra.mxu0 %v92
  %248 = vmatpush.msra.mxu0 %v91
  %249 = vmatpush.msra.mxu0 %v90
  %250 = vmatpush.msra.mxu0 %v89
  %251 = vmatpush.msra.mxu0 %v88
  %252 = vmatpush.msra.mxu0 %v87
  %253 = vmatpush.msra.mxu0 %v86
  %254 = vmatmul.f32.gmra.mxu0 %v15
  %v255 = vpop.f32.mrf.mxu0
  %v256 = vadd.f32 %v215, %v255
  %257 = vmatmul.f32.gmra.mxu0 %v22
  %v258 = vpop.f32.mrf.mxu0
  %v259 = vadd.f32 %v218, %v258
  %260 = vmatmul.f32.gmra.mxu0 %v29
  %v261 = vpop.f32.mrf.mxu0
  %v262 = vadd.f32 %v221, %v261
  %263 = vmatmul.f32.gmra.mxu0 %v36
  %v264 = vpop.f32.mrf.mxu0
  %v265 = vadd.f32 %v224, %v264
  %266 = vmatmul.f32.gmra.mxu0 %v43
  %v267 = vpop.f32.mrf.mxu0
  %v268 = vadd.f32 %v227, %v267
  %269 = vmatmul.f32.gmra.mxu0 %v50
  %v270 = vpop.f32.mrf.mxu0
  %v271 = vadd.f32 %v230, %v270
  %272 = vmatmul.f32.gmra.mxu0 %v57
  %v273 = vpop.f32.mrf.mxu0
  %v274 = vadd.f32 %v233, %v273
  %275 = vmatmul.f32.gmra.mxu0 %v64
  %v276 = vpop.f32.mrf.mxu0
  %v277 = vadd.f32 %v236, %v276
  %278 = vdwg.mxu0
  %279 = vmatpush.msra.mxu0 %v117
  %280 = vmatpush.msra.mxu0 %v116
  %281 = vmatpush.msra.mxu0 %v115
  %282 = vmatpush.msra.mxu0 %v114
  %283 = vmatpush.msra.mxu0 %v113
  %284 = vmatpush.msra.mxu0 %v112
  %285 = vmatpush.msra.mxu0 %v111
  %286 = vmatpush.msra.mxu0 %v110
  %287 = vmatpush.msra.mxu0 %v109
  %288 = vmatpush.msra.mxu0 %v108
  %289 = vmatpush.msra.mxu0 %v107
  %290 = vmatpush.msra.mxu0 %v106
  %291 = vmatpush.msra.mxu0 %v105
  %292 = vmatpush.msra.mxu0 %v104
  %293 = vmatpush.msra.mxu0 %v103
  %294 = vmatpush.msra.mxu0 %v102
  %295 = vmatmul.f32.gmra.mxu0 %v16
  %v296 = vpop.f32.mrf.mxu0
  %v297 = vadd.f32 %v256, %v296
  %298 = vmatmul.f32.gmra.mxu0 %v23
  %v299 = vpop.f32.mrf.mxu0
  %v300 = vadd.f32 %v259, %v299
  %301 = vmatmul.f32.gmra.mxu0 %v30
  %v302 = vpop.f32.mrf.mxu0
  %v303 = vadd.f32 %v262, %v302
  %304 = vmatmul.f32.gmra.mxu0 %v37
  %v305 = vpop.f32.mrf.mxu0
  %v306 = vadd.f32 %v265, %v305
  %307 = vmatmul.f32.gmra.mxu0 %v44
  %v308 = vpop.f32.mrf.mxu0
  %v309 = vadd.f32 %v268, %v308
  %310 = vmatmul.f32.gmra.mxu0 %v51
  %v311 = vpop.f32.mrf.mxu0
  %v312 = vadd.f32 %v271, %v311
  %313 = vmatmul.f32.gmra.mxu0 %v58
  %v314 = vpop.f32.mrf.mxu0
  %v315 = vadd.f32 %v274, %v314
  %316 = vmatmul.f32.gmra.mxu0 %v65
  %v317 = vpop.f32.mrf.mxu0
  %v318 = vadd.f32 %v277, %v317
  %319 = vdwg.mxu0
  %320 = vmatpush.msra.mxu0 %v133
  %321 = vmatpush.msra.mxu0 %v132
  %322 = vmatpush.msra.mxu0 %v131
  %323 = vmatpush.msra.mxu0 %v130
  %324 = vmatpush.msra.mxu0 %v129
  %325 = vmatpush.msra.mxu0 %v128
  %326 = vmatpush.msra.mxu0 %v127
  %327 = vmatpush.msra.mxu0 %v126
  %328 = vmatpush.msra.mxu0 %v125
  %329 = vmatpush.msra.mxu0 %v124
  %330 = vmatpush.msra.mxu0 %v123
  %331 = vmatpush.msra.mxu0 %v122
  %332 = vmatpush.msra.mxu0 %v121
  %333 = vmatpush.msra.mxu0 %v120
  %334 = vmatpush.msra.mxu0 %v119
  %335 = vmatpush.msra.mxu0 %v118
  %336 = vmatmul.f32.gmra.mxu0 %v17
  %v337 = vpop.f32.mrf.mxu0
  %v338 = vadd.f32 %v297, %v337
  %339 = vmatmul.f32.gmra.mxu0 %v24
  %v340 = vpop.f32.mrf.mxu0
  %v341 = vadd.f32 %v300, %v340
  %342 = vmatmul.f32.gmra.mxu0 %v31
  %v343 = vpop.f32.mrf.mxu0
  %v344 = vadd.f32 %v303, %v343
  %345 = vmatmul.f32.gmra.mxu0 %v38
  %v346 = vpop.f32.mrf.mxu0
  %v347 = vadd.f32 %v306, %v346
  %348 = vmatmul.f32.gmra.mxu0 %v45
  %v349 = vpop.f32.mrf.mxu0
  %v350 = vadd.f32 %v309, %v349
  %351 = vmatmul.f32.gmra.mxu0 %v52
  %v352 = vpop.f32.mrf.mxu0
  %v353 = vadd.f32 %v312, %v352
  %354 = vmatmul.f32.gmra.mxu0 %v59
  %v355 = vpop.f32.mrf.mxu0
  %v356 = vadd.f32 %v315, %v355
  %357 = vmatmul.f32.gmra.mxu0 %v66
  %v358 = vpop.f32.mrf.mxu0
  %v359 = vadd.f32 %v318, %v358
  %360 = vdwg.mxu0
  %361 = vmatpush.msra.mxu0 %v149
  %362 = vmatpush.msra.mxu0 %v148
  %363 = vmatpush.msra.mxu0 %v147
  %364 = vmatpush.msra.mxu0 %v146
  %365 = vmatpush.msra.mxu0 %v145
  %366 = vmatpush.msra.mxu0 %v144
  %367 = vmatpush.msra.mxu0 %v143
  %368 = vmatpush.msra.mxu0 %v142
  %369 = vmatpush.msra.mxu0 %v141
  %370 = vmatpush.msra.mxu0 %v140
  %371 = vmatpush.msra.mxu0 %v139
  %372 = vmatpush.msra.mxu0 %v138
  %373 = vmatpush.msra.mxu0 %v137
  %374 = vmatpush.msra.mxu0 %v136
  %375 = vmatpush.msra.mxu0 %v135
  %376 = vmatpush.msra.mxu0 %v134
  %377 = vmatmul.f32.gmra.mxu0 %v18
  %v378 = vpop.f32.mrf.mxu0
  %v379 = vadd.f32 %v338, %v378
  %380 = vmatmul.f32.gmra.mxu0 %v25
  %v381 = vpop.f32.mrf.mxu0
  %v382 = vadd.f32 %v341, %v381
  %383 = vmatmul.f32.gmra.mxu0 %v32
  %v384 = vpop.f32.mrf.mxu0
  %v385 = vadd.f32 %v344, %v384
  %386 = vmatmul.f32.gmra.mxu0 %v39
  %v387 = vpop.f32.mrf.mxu0
  %v388 = vadd.f32 %v347, %v387
  %389 = vmatmul.f32.gmra.mxu0 %v46
  %v390 = vpop.f32.mrf.mxu0
  %v391 = vadd.f32 %v350, %v390
  %392 = vmatmul.f32.gmra.mxu0 %v53
  %v393 = vpop.f32.mrf.mxu0
  %v394 = vadd.f32 %v353, %v393
  %395 = vmatmul.f32.gmra.mxu0 %v60
  %v396 = vpop.f32.mrf.mxu0
  %v397 = vadd.f32 %v356, %v396
  %398 = vmatmul.f32.gmra.mxu0 %v67
  %v399 = vpop.f32.mrf.mxu0
  %v400 = vadd.f32 %v359, %v399
  %401 = vdwg.mxu0
  %402 = vmatpush.msra.mxu0 %v165
  %403 = vmatpush.msra.mxu0 %v164
  %404 = vmatpush.msra.mxu0 %v163
  %405 = vmatpush.msra.mxu0 %v162
  %406 = vmatpush.msra.mxu0 %v161
  %407 = vmatpush.msra.mxu0 %v160
  %408 = vmatpush.msra.mxu0 %v159
  %409 = vmatpush.msra.mxu0 %v158
  %410 = vmatpush.msra.mxu0 %v157
  %411 = vmatpush.msra.mxu0 %v156
  %412 = vmatpush.msra.mxu0 %v155
  %413 = vmatpush.msra.mxu0 %v154
  %414 = vmatpush.msra.mxu0 %v153
  %415 = vmatpush.msra.mxu0 %v152
  %416 = vmatpush.msra.mxu0 %v151
  %417 = vmatpush.msra.mxu0 %v150
  %418 = vmatmul.f32.gmra.mxu0 %v19
  %v419 = vpop.f32.mrf.mxu0
  %v420 = vadd.f32 %v379, %v419
  %421 = vmatmul.f32.gmra.mxu0 %v26
  %v422 = vpop.f32.mrf.mxu0
  %v423 = vadd.f32 %v382, %v422
  %424 = vmatmul.f32.gmra.mxu0 %v33
  %v425 = vpop.f32.mrf.mxu0
  %v426 = vadd.f32 %v385, %v425
  %427 = vmatmul.f32.gmra.mxu0 %v40
  %v428 = vpop.f32.mrf.mxu0
  %v429 = vadd.f32 %v388, %v428
  %430 = vmatmul.f32.gmra.mxu0 %v47
  %v431 = vpop.f32.mrf.mxu0
  %v432 = vadd.f32 %v391, %v431
  %433 = vmatmul.f32.gmra.mxu0 %v54
  %v434 = vpop.f32.mrf.mxu0
  %v435 = vadd.f32 %v394, %v434
  %436 = vmatmul.f32.gmra.mxu0 %v61
  %v437 = vpop.f32.mrf.mxu0
  %v438 = vadd.f32 %v397, %v437
  %439 = vmatmul.f32.gmra.mxu0 %v68
  %v440 = vpop.f32.mrf.mxu0
  %v441 = vadd.f32 %v400, %v440
  %442 = vdwg.mxu0
  %443 = vmatpush.msra.mxu0 0.0
  %444 = vmatpush.msra.mxu0 0.0
  %445 = vmatpush.msra.mxu0 0.0
  %446 = vmatpush.msra.mxu0 0.0
  %447 = vmatpush.msra.mxu0 0.0
  %448 = vmatpush.msra.mxu0 0.0
  %449 = vmatpush.msra.mxu0 0.0
  %450 = vmatpush.msra.mxu0 0.0
  %451 = vmatpush.msra.mxu0 0.0
  %452 = vmatpush.msra.mxu0 0.0
  %453 = vmatpush.msra.mxu0 0.0
  %454 = vmatpush.msra.mxu0 0.0
  %455 = vmatpush.msra.mxu0 0.0
  %456 = vmatpush.msra.mxu0 0.0
  %457 = vmatpush.msra.mxu0 %v167
  %458 = vmatpush.msra.mxu0 %v166
  %459 = vmatmul.f32.gmra.mxu0 %v174
  %v460 = vpop.f32.mrf.mxu0
  %v461 = vadd.f32 %v420, %v460
  %462 = vmatmul.f32.gmra.mxu0 %v177
  %v463 = vpop.f32.mrf.mxu0
  %v464 = vadd.f32 %v423, %v463
  %465 = vmatmul.f32.gmra.mxu0 %v180
  %v466 = vpop.f32.mrf.mxu0
  %v467 = vadd.f32 %v426, %v466
  %468 = vmatmul.f32.gmra.mxu0 %v183
  %v469 = vpop.f32.mrf.mxu0
  %v470 = vadd.f32 %v429, %v469
  %471 = vmatmul.f32.gmra.mxu0 %v186
  %v472 = vpop.f32.mrf.mxu0
  %v473 = vadd.f32 %v432, %v472
  %474 = vmatmul.f32.gmra.mxu0 %v189
  %v475 = vpop.f32.mrf.mxu0
  %v476 = vadd.f32 %v435, %v475
  %477 = vmatmul.f32.gmra.mxu0 %v192
  %v478 = vpop.f32.mrf.mxu0
  %v479 = vadd.f32 %v438, %v478
  %480 = vmatmul.f32.gmra.mxu0 %v195
  %v481 = vpop.f32.mrf.mxu0
  %v482 = vadd.f32 %v441, %v481
  %483 = vdwg.mxu0
  %vm484 = vcmask 80896
  %485 = vst.msk [vmem:[%s3] sm:$0xff] %vm484, %v461
  %486 = vst.msk [vmem:[%s3 + $0x8] sm:$0xff] %vm484, %v464
  %487 = vst.msk [vmem:[%s3 + $0x10] sm:$0xff] %vm484, %v467
  %488 = vst.msk [vmem:[%s3 + $0x18] sm:$0xff] %vm484, %v470
  %489 = vst.msk [vmem:[%s3 + $0x20] sm:$0xff] %vm484, %v473
  %490 = vst.msk [vmem:[%s3 + $0x28] sm:$0xff] %vm484, %v476
  %491 = vst.msk [vmem:[%s3 + $0x30] sm:$0xff] %vm484, %v479
  %492 = vst.msk [vmem:[%s3 + $0x38] sm:$0xff] %vm484, %v482
  // Predicated region
  $region14: #{mnist_logistic_forward.1} parent=0 // pred_check
    _
  $region15: #{mnist_logistic_forward.1} parent=0 // pred_check_branch
    %494 = sbr.rel (0) target = $region17
  $region16: #{mnist_logistic_forward.1} parent=0 // pred_region
    _
  $region17: #{mnist_logistic_forward.1} parent=0 // pred_fallthru
    _
  // Predicated region
  $region18: #{mnist_logistic_forward.1} parent=0 // pred_check
    _
  $region19: #{mnist_logistic_forward.1} parent=0 // pred_check_branch
    %496 = sbr.rel (0) target = $region21
  $region20: #{mnist_logistic_forward.1} parent=0 // pred_region
    _
  $region21: #{mnist_logistic_forward.1} parent=0 // pred_fallthru
    _

</llo_original>
